<compile_context>
chip_gen: v5e
topology: v5e:2x2
jax: 0.10.0
libtpu: 0.0.40
codegen_flags: <defaults>
</compile_context>

<pallas_src>
import jax
import jax.numpy as jnp
from jax import lax
from jax.experimental import pallas as pl
from jax.experimental.pallas import tpu as pltpu

_A = -0.75  # bicubic convolution constant used by PyTorch grid_sample


def _cubic_coeffs(t):
    """PyTorch get_cubic_upsample_coefficients for taps (-1, 0, +1, +2)."""
    def cc1(x):  # |x| <= 1
        return ((_A + 2.0) * x - (_A + 3.0)) * x * x + 1.0

    def cc2(x):  # 1 < |x| < 2
        return ((_A * x - 5.0 * _A) * x + 8.0 * _A) * x - 4.0 * _A

    return (cc2(t + 1.0), cc1(t), cc1(1.0 - t), cc2(2.0 - t))


def _reflect_clip(coord, size):
    """PyTorch reflect_coordinates(coord, 0, 2*(size-1)) + clip, align_corners=True."""
    span = float(size - 1)
    c = jnp.abs(coord)
    flips = jnp.floor(c / span)
    extra = c - flips * span                       # == fmod(c, span) for c >= 0
    parity = flips - 2.0 * jnp.floor(flips * 0.5)  # 0 if even, 1 if odd
    refl = jnp.where(parity == 0.0, extra, span - extra)
    return jnp.clip(refl, 0.0, span)


# --------------------- interpolation matrices (host glue) ------------------ #

def _interp_matrix_T(src, size):
    """Transposed bicubic interpolation matrix.

    src: (B, size_out) unnormalized source coords (float32).
    Returns MT of shape (B, size_in, size_out) with
        MT[b, q, n] = weight of input sample q contributing to output sample n.
    """
    src = src.astype(jnp.float32)
    nw = jnp.floor(src)
    t = src - nw
    c0, c1, c2, c3 = _cubic_coeffs(t)
    coeffs = jnp.stack([c0, c1, c2, c3], axis=-1)                      # (B, n, 4)
    taps = jnp.array([-1.0, 0.0, 1.0, 2.0], dtype=jnp.float32)
    idx = _reflect_clip(nw[..., None] + taps, size).astype(jnp.int32)  # (B, n, 4)
    onehot = (idx[..., None] == jnp.arange(size, dtype=jnp.int32)
              ).astype(jnp.float32)                                    # (B, n, 4, q)
    # Duplicate reflected indices correctly accumulate their weights.
    return jnp.einsum('bnt,bntq->bqn', coeffs, onehot)                 # (B, q, n)


# ------------------------------ Pallas kernels ------------------------------ #

def _make_fold_kernel(Ct, H, W):
    """Small-image variant: both passes are single big-M MXU matmuls; one fused
    3-D relayout between the passes (cast to narrow dtype BEFORE transposing)."""
    def kernel(wyT_ref, wxT_ref, x_ref, out_ref):
        # wyT_ref: (1, H, H)   wyT[p, m]  (input row p -> output row m)
        # wxT_ref: (1, W, W)   wxT[q, n]  (input col q -> output col n)
        # x_ref:   (1, Ct*H, W)  Ct channels stacked along rows
        cdt = wxT_ref.dtype
        # Pass 1 (columns): one (Ct*H, W) @ (W, W) MXU matmul over all channels.
        tmp = jnp.dot(x_ref[0].astype(cdt), wxT_ref[0],
                      preferred_element_type=jnp.float32)              # (Ct*H, W) f32
        # Fused relayout: cast first (halves XLU traffic on bf16), then one
        # batched minor-dims transpose instead of Ct unrolled 2-D transposes.
        tmpT = jnp.swapaxes(tmp.astype(cdt).reshape(Ct, H, W), 1, 2
                            ).reshape(Ct * W, H)                       # (Ct*W, H)
        # Pass 2 (rows): one (Ct*W, H) @ (H, H) MXU matmul.
        outT = jnp.dot(tmpT, wyT_ref[0],
                       preferred_element_type=jnp.float32)             # (Ct*W, H) f32
        out_ref[0] = jnp.swapaxes(
            outT.astype(out_ref.dtype).reshape(Ct, W, H), 1, 2
        ).reshape(Ct * H, W)

    return kernel


def _make_batched_kernel(Ct, H, W):
    """Large-image variant (H, W >= 128): pass 2 is a per-channel batched
    dot_general contracting H, so NO XLU relayout competes with vmatmul."""
    def kernel(wy_ref, wxT_ref, x_ref, out_ref):
        # wy_ref:  (1, H, H)   wy[m, p]  (output row m <- input row p)
        # wxT_ref: (1, W, W)   wxT[q, n]
        cdt = wxT_ref.dtype
        # Pass 1 (columns): one big (Ct*H, W) @ (W, W) MXU matmul.
        tmp = jnp.dot(x_ref[0].astype(cdt), wxT_ref[0],
                      preferred_element_type=jnp.float32)              # (Ct*H, W) f32
        tmp3 = tmp.astype(cdt).reshape(Ct, H, W)
        # Pass 2 (rows): batched per-channel (H,H) @ (H,W) MXU matmuls.
        wy_b = jnp.broadcast_to(wy_ref[0][None], (Ct, H, H))           # hoisted once
        out3 = lax.dot_general(
            wy_b, tmp3, (((2,), (1,)), ((0,), (0,))),
            preferred_element_type=jnp.float32)                        # (Ct, H, W) f32
        out_ref[0] = out3.astype(out_ref.dtype).reshape(Ct * H, W)

    return kernel


# ----------------------- budgeting / tiling (host glue) -------------------- #

def _vmem_budgets():
    """(per-step working-set budget, vmem_limit_bytes), generation-aware."""
    try:
        cap = int(pltpu.get_tpu_info().vmem_capacity_bytes)
    except Exception:
        cap = 64 * 1024 * 1024  # conservative default (v7x per-TC VMEM)
    if cap <= 80 * 1024 * 1024:
        # v7x-class: 64 MiB per TensorCore -> keep full double-buffering.
        return 14 * 1024 * 1024, 40 * 1024 * 1024
    # v5e / v6e: 128 MiB VMEM, lowest HBM BW -> maximal per-step slabs.
    return 36 * 1024 * 1024, 72 * 1024 * 1024


def _pick_channel_tile(B, C, H, W, x_itemsize, w_itemsize, budget):
    """Largest channel tile whose double-buffered working set fits `budget`."""

    def est(ct):
        img = ct * H * W
        blocks = 4 * img * x_itemsize                      # in + out, 2x buffered
        weights = 4 * (H * H + W * W) * w_itemsize         # wyT + wxT, 2x buffered
        interm = img * (8 + 2 * w_itemsize + x_itemsize)   # f32 matmul outs + casts/relayout
        bcast = ct * (H * H + W * W) * w_itemsize          # batched-variant broadcast weights
        return blocks + weights + interm + bcast

    # Divisors of C only; when Ct < C the x/out block's second-to-last dim
    # (Ct*H) must be a multiple of 8 for the (8,128) BlockSpec rule.
    cands = [d for d in range(1, C + 1)
             if C % d == 0 and (d == C or (d * H) % 8 == 0)]
    fitting = [d for d in cands if est(d) <= budget] or [min(cands)]
    ct = max(fitting)
    if B == 1 and C >= 2:
        # v7x has 2 TensorCores: keep >= 2 parallel grid steps when batch == 1.
        two_plus = [d for d in fitting if C // d >= 2]
        if two_plus:
            ct = max(two_plus)
    return ct
    # TODO(synk): for very large single-channel images (smallest Ct still over
    # budget) an additional H-tile grid axis would be needed; likewise a 2-way
    # output-row split would feed v7x's second TensorCore when B == C == 1.


# ------------------------------- dispatcher -------------------------------- #

def _xla_separable_resample(x, wyT, wxT, compute_dtype):
    """Plain-XLA path for tiny images (W or H < 128)."""
    xc = x.astype(compute_dtype)
    tmp = jnp.einsum('bchq,bqn->bchn', xc, wxT,
                     preferred_element_type=jnp.float32)
    out = jnp.einsum('bpm,bcpn->bcmn', wyT, tmp.astype(compute_dtype),
                     preferred_element_type=jnp.float32)
    return out.astype(x.dtype)


def _pallas_resample(x2, w_row, wxT, B, C, Ct, H, W, variant, vmem_limit):
    make = _make_fold_kernel if variant == "fold" else _make_batched_kernel
    kernel = make(Ct, H, W)
    return pl.pallas_call(
        kernel,
        out_shape=jax.ShapeDtypeStruct((B, C * H, W), x2.dtype),
        grid_spec=pltpu.PrefetchScalarGridSpec(
            num_scalar_prefetch=0,
            grid=(B, C // Ct),   # c innermost: weight blocks are revisited (no re-DMA)
            in_specs=[
                pl.BlockSpec((1, H, H), lambda b, c: (b, 0, 0)),        # row weights
                pl.BlockSpec((1, W, W), lambda b, c: (b, 0, 0)),        # col weights (T)
                # TODO(synk): if profiling shows exposed input DMA at the chosen
                # Ct, add pipeline_mode=pl.Buffered(3) here (shrink Ct on v7x).
                pl.BlockSpec((1, Ct * H, W), lambda b, c: (b, c, 0)),   # image slab
            ],
            out_specs=pl.BlockSpec((1, Ct * H, W), lambda b, c: (b, c, 0)),
        ),
        compiler_params=pltpu.CompilerParams(
            dimension_semantics=("parallel", "parallel"),
            vmem_limit_bytes=vmem_limit,
        ),
    )(w_row, wxT, x2)


def grid_sample_bicubic_reflection(x, src_x, src_y, *, force_pallas=False,
                                   compute_in_bf16=False, variant=None):
    """x: (B,C,H,W); src_x: (B,W) width coords; src_y: (B,H) height coords.

    compute_in_bf16=True is a v5e lever for f32 inputs at large H/W (bf16-native
    MXU); keep False when strict torch parity is required.
    """
    B, C, H, W = x.shape
    if x.dtype == jnp.dtype(jnp.bfloat16) or compute_in_bf16:
        compute_dtype = jnp.bfloat16
    else:
        compute_dtype = jnp.float32

    # Per-batch interpolation matrices (cheap, plain JAX, f32 coord math).
    wxT = _interp_matrix_T(src_x.astype(jnp.float32), W).astype(compute_dtype)  # (B,W,W)
    wyT = _interp_matrix_T(src_y.astype(jnp.float32), H).astype(compute_dtype)  # (B,H,H)

    if not force_pallas and (H < 128 or W < 128):
        # Sub-128 output lane widths force masked vst.msk partial stores and the
        # per-step pallas_call overhead dominates for tiny tiles -> plain XLA.
        return _xla_separable_resample(x, wyT, wxT, compute_dtype)

    budget, vmem_limit = _vmem_budgets()
    x_itemsize = jnp.dtype(x.dtype).itemsize
    w_itemsize = jnp.dtype(compute_dtype).itemsize
    Ct = _pick_channel_tile(B, C, H, W, x_itemsize, w_itemsize, budget)

    if variant is None:
        # Large images: per-channel matmuls already fill the MXU, so drop the
        # relayouts; small images: fold channels into M for MXU fill.
        variant = "batched" if min(H, W) >= 128 else "fold"
    w_row = wyT if variant == "fold" else jnp.swapaxes(wyT, 1, 2)

    # Fold channels into rows so the kernel sees a 3-D, lane-dense slab.
    x2 = x.reshape(B, C * H, W)
    out2 = _pallas_resample(x2, w_row, wxT, B, C, Ct, H, W, variant, vmem_limit)
    return out2.reshape(B, C, H, W)


# -------------------------------- host glue -------------------------------- #

def _sample_grid_coords(key, b, h, w, factors):
    """Replicates the torch grid construction; returns unnormalized src coords.

    Scope limit: square images only (the torch .view mixes H/W otherwise).
    All coordinate math is done in float32 regardless of the image dtype.
    """
    assert h == w, "Scale kernel assumes square images (torch .view mixes H/W otherwise)"
    assert h > 1 and w > 1
    dtype = jnp.float32
    kf, kc = jax.random.split(key)
    # sample_from(factors, shape=(b,))
    vals = jnp.asarray(factors, dtype=dtype)
    idx = jnp.floor(len(factors) * jax.random.uniform(kf, (b,), dtype=dtype)).astype(jnp.int32)
    factor = jnp.tile(vals[idx].reshape(b, 1, 1, 1), (1, 1, 1, 2))      # (b,1,1,2)
    center = 2.0 * jax.random.uniform(kc, (b, 2), dtype=dtype) - 1.0
    center = center.reshape(b, 1, 1, 2)
    u = 2.0 / w * jnp.arange(w, dtype=dtype) - 1.0
    v = 2.0 / h * jnp.arange(h, dtype=dtype) - 1.0
    U = jnp.broadcast_to(u[:, None], (w, h))
    V = jnp.broadcast_to(v[None, :], (w, h))
    grid = jnp.stack([V, U], axis=-1)                                   # (w, h, 2)
    grid = grid.reshape(1, h, w, 2)                                     # torch .view
    grid = jnp.tile(grid, (b, 1, 1, 1))
    grid = 1.0 / factor * (grid - center) + center                      # (b, h, w, 2)
    # separable (h == w): x depends only on column, y only on row
    gx = grid[:, 0, :, 0]                                               # (b, w)
    gy = grid[:, :, 0, 1]                                               # (b, h)
    # align_corners=True unnormalization
    src_x = (gx + 1.0) * 0.5 * (w - 1)
    src_y = (gy + 1.0) * 0.5 * (h - 1)
    return src_x, src_y


def scale_forward(x, key, factors=(0.75, 0.5)):
    """JAX/Pallas equivalent of Scale().forward(x). x: (B,C,H,W).

    TODO(synk): uses JAX PRNG, so the random factor/center draws differ from
    torch's RNG stream; the deterministic resampling itself matches grid_sample.
    """
    b, _, h, w = x.shape
    src_x, src_y = _sample_grid_coords(key, b, h, w, factors)
    return grid_sample_bicubic_reflection(x, src_x, src_y)


# ----------------------- pure-JAX reference (for check) -------------------- #

def _reference_grid_sample(x, src_x, src_y):
    B, C, H, W = x.shape
    taps = jnp.array([-1.0, 0.0, 1.0, 2.0], dtype=jnp.float32)

    def coeffs(t):
        c0, c1, c2, c3 = _cubic_coeffs(t)
        return jnp.stack([c0, c1, c2, c3], axis=-1)

    src_x = src_x.astype(jnp.float32)
    src_y = src_y.astype(jnp.float32)
    nx = jnp.floor(src_x)
    ny = jnp.floor(src_y)
    cx = coeffs(src_x - nx)                                        # (B, W, 4)
    cy = coeffs(src_y - ny)                                        # (B, H, 4)
    ix = _reflect_clip(nx[..., None] + taps, W).astype(jnp.int32)  # (B, W, 4)
    iy = _reflect_clip(ny[..., None] + taps, H).astype(jnp.int32)  # (B, H, 4)

    def per_batch(xb, ixb, iyb, cxb, cyb):
        g = xb[:, :, ixb]                                          # (C, H, W, 4)
        gx = jnp.einsum('chwj,wj->chw', g.astype(jnp.float32), cxb)
        g2 = gx[:, iyb, :]                                         # (C, H, 4, W)
        return jnp.einsum('chjw,hj->chw', g2, cyb)                 # (C, H, W)

    return jax.vmap(per_batch)(x, ix, iy, cx, cy).astype(x.dtype)


if __name__ == "__main__":
    key = jax.random.PRNGKey(0)
    kx, kt = jax.random.split(key)
    B, C, H, W = 2, 4, 16, 16
    x = jax.random.normal(kx, (B, C, H, W), dtype=jnp.float32)

    src_x, src_y = _sample_grid_coords(kt, B, H, W, (0.75, 0.5))
    ref = _reference_grid_sample(x, src_x, src_y)

    # Pallas kernel, fold variant (big-M matmuls + fused relayout).
    out_fold = jax.block_until_ready(
        grid_sample_bicubic_reflection(x, src_x, src_y,
                                       force_pallas=True, variant="fold"))
    assert out_fold.shape == x.shape and out_fold.dtype == x.dtype
    assert bool(jnp.allclose(out_fold, ref, atol=1e-4, rtol=1e-4)), \
        "fold kernel mismatch vs reference"

    # Pallas kernel, batched (no-relayout) variant used for large images.
    out_bat = jax.block_until_ready(
        grid_sample_bicubic_reflection(x, src_x, src_y,
                                       force_pallas=True, variant="batched"))
    assert bool(jnp.allclose(out_bat, ref, atol=1e-4, rtol=1e-4)), \
        "batched kernel mismatch vs reference"

    # Default dispatch (XLA fallback at this tiny size) + module entry point.
    out_default = jax.block_until_ready(
        grid_sample_bicubic_reflection(x, src_x, src_y))
    assert bool(jnp.allclose(out_default, ref, atol=1e-4, rtol=1e-4))
    out_mod = jax.block_until_ready(scale_forward(x, kt))
    assert out_mod.shape == x.shape and out_mod.dtype == x.dtype

    print("KERNEL_OK")
</pallas_src>

<mosaic_0001>
module attributes {stable_mosaic.version = 11 : i64} {
  func.func @kernel(%arg0: i32, %arg1: i32, %arg2: memref<1x16x16xf32, #tpu.memory_space<vmem>>, %arg3: memref<1x16x16xf32, #tpu.memory_space<vmem>>, %arg4: memref<1x64x16xf32, #tpu.memory_space<vmem>>, %arg5: memref<1x64x16xf32, #tpu.memory_space<vmem>>) attributes {dimension_semantics = [#tpu.dimension_semantics<parallel>, #tpu.dimension_semantics<parallel>], iteration_bounds = array<i64: 2, 1>, scalar_prefetch = 0 : i64, scratch_operands = 0 : i64, tpu.core_type = #tpu.core_type<tc>, window_params = [{transform_indices = @transform_0, window_bounds = array<i64: 1, 16, 16>}, {transform_indices = @transform_1, window_bounds = array<i64: 1, 16, 16>}, {transform_indices = @transform_2, window_bounds = array<i64: 1, 64, 16>}, {transform_indices = @transform_3, window_bounds = array<i64: 1, 64, 16>}]} {
    %c0 = arith.constant 0 : index
    %c0_0 = arith.constant 0 : index
    %c0_1 = arith.constant 0 : index
    %0 = vector.load %arg4[%c0, %c0_0, %c0_1] : memref<1x64x16xf32, #tpu.memory_space<vmem>>, vector<1x64x16xf32>
    %1 = vector.shape_cast %0 : vector<1x64x16xf32> to vector<64x16xf32>
    %c0_2 = arith.constant 0 : index
    %c0_3 = arith.constant 0 : index
    %c0_4 = arith.constant 0 : index
    %2 = vector.load %arg3[%c0_2, %c0_3, %c0_4] : memref<1x16x16xf32, #tpu.memory_space<vmem>>, vector<1x16x16xf32>
    %3 = vector.shape_cast %2 : vector<1x16x16xf32> to vector<16x16xf32>
    %cst = arith.constant dense<0.000000e+00> : vector<64x16xf32>
    %4 = tpu.matmul %1, %3, %cst {dimension_numbers = #tpu.dot_dimension_numbers<[1], [0], [0], [1], [0, 0, 1, 1], [], []>} : vector<64x16xf32>, vector<16x16xf32>, vector<64x16xf32> -> vector<64x16xf32>
    %5 = vector.shape_cast %4 : vector<64x16xf32> to vector<4x16x16xf32>
    %6 = tpu.transpose %5, [0, 2, 1] : vector<4x16x16xf32> -> vector<4x16x16xf32>
    %7 = vector.shape_cast %6 : vector<4x16x16xf32> to vector<64x16xf32>
    %c0_5 = arith.constant 0 : index
    %c0_6 = arith.constant 0 : index
    %c0_7 = arith.constant 0 : index
    %8 = vector.load %arg2[%c0_5, %c0_6, %c0_7] : memref<1x16x16xf32, #tpu.memory_space<vmem>>, vector<1x16x16xf32>
    %9 = vector.shape_cast %8 : vector<1x16x16xf32> to vector<16x16xf32>
    %cst_8 = arith.constant dense<0.000000e+00> : vector<64x16xf32>
    %10 = tpu.matmul %7, %9, %cst_8 {dimension_numbers = #tpu.dot_dimension_numbers<[1], [0], [0], [1], [0, 0, 1, 1], [], []>} : vector<64x16xf32>, vector<16x16xf32>, vector<64x16xf32> -> vector<64x16xf32>
    %11 = vector.shape_cast %10 : vector<64x16xf32> to vector<4x16x16xf32>
    %12 = tpu.transpose %11, [0, 2, 1] : vector<4x16x16xf32> -> vector<4x16x16xf32>
    %13 = vector.shape_cast %12 : vector<4x16x16xf32> to vector<64x16xf32>
    %c0_9 = arith.constant 0 : index
    %c0_10 = arith.constant 0 : index
    %c0_11 = arith.constant 0 : index
    %14 = vector.load %arg5[%c0_9, %c0_10, %c0_11] : memref<1x64x16xf32, #tpu.memory_space<vmem>>, vector<1x64x16xf32>
    %15 = vector.shape_cast %14 : vector<1x64x16xf32> to vector<64x16xf32>
    %16 = vector.shape_cast %13 : vector<64x16xf32> to vector<1x64x16xf32>
    tpu.vector_store %arg5[%c0_9, %c0_10, %c0_11], %16 {strides = array<i32>} : memref<1x64x16xf32, #tpu.memory_space<vmem>>, vector<1x64x16xf32>,
    return
  }
  func.func @transform_0(%arg0: i32, %arg1: i32) -> (i32, i32, i32) {
    %c0_i32 = arith.constant 0 : i32
    %c0_i32_0 = arith.constant 0 : i32
    %c0_i32_1 = arith.constant 0 : i32
    return %arg0, %c0_i32, %c0_i32_0 : i32, i32, i32
  }
  func.func @transform_1(%arg0: i32, %arg1: i32) -> (i32, i32, i32) {
    %c0_i32 = arith.constant 0 : i32
    %c0_i32_0 = arith.constant 0 : i32
    %c0_i32_1 = arith.constant 0 : i32
    return %arg0, %c0_i32, %c0_i32_0 : i32, i32, i32
  }
  func.func @transform_2(%arg0: i32, %arg1: i32) -> (i32, i32, i32) {
    %c0_i32 = arith.constant 0 : i32
    %c0_i32_0 = arith.constant 0 : i32
    return %arg0, %arg1, %c0_i32 : i32, i32, i32
  }
  func.func @transform_3(%arg0: i32, %arg1: i32) -> (i32, i32, i32) {
    %c0_i32 = arith.constant 0 : i32
    %c0_i32_0 = arith.constant 0 : i32
    return %arg0, %arg1, %c0_i32 : i32, i32, i32
  }
}

</mosaic_0001>

<llo_original>
// kernel: tpu_custom_call.1
$region0: #{tpu_custom_call.1}
  #allocation0 [shape = 'u32[]', space=smem, size = 0x4, offset = 0x4, fixed_abs, tag = 'smem constant byte address 0x4 - core index']
  #allocation1 [shape = 'u32[72,128]{1,0:T(1,128)}', space=vmem, size = 0x9000, scoped, tag = 'internal scratch']
  %s0 = inlined_call_operand.vmem [shape: f32[2,16,16], index: 0, kind: input, shape index: {}]
  %s1 = inlined_call_operand.vmem [shape: f32[2,16,16], index: 1, kind: input, shape index: {}]
  %s2 = inlined_call_operand.vmem [shape: f32[2,64,16], index: 2, kind: input, shape index: {}]
  %s3 = inlined_call_operand.vmem [shape: f32[2,64,16], index: 3, kind: output, shape index: {}]
  %s4 = sld [smem:[#allocation0]]
  $region45: #{tpu_custom_call.1} parent=0
    _
  %s6 = ssub.s32 1, %s4
  %s7 = scalar_select 0, %s6, %s4
  loop: start=0, step=1, limit=4
  $region2: #{tpu_custom_call.1} parent=0 // loop_pre_header
    _
  $region3: #{tpu_custom_call.1} parent=0 // loop_header
    %s9 = sphi 0, %s13
    %p10 = scmp.ge.s32.totalorder %s9, 4
    %s16 = sphi 0, %s28
    %s17 = sphi 0, %s24
    %s18 = sphi 0, %s16
    %s19 = sphi 0, %s17
    %s20 = sphi 0, %s18
    %s21 = sphi 0, %s19
    %s31 = sphi 0, %s33
    %s34 = sphi 0, %s31
    %s35 = sphi 0, %s34
    %s51 = sphi 0, %s35
    %s57 = sphi 0, %s59
    %s60 = sphi 0, %s57
    %s61 = sphi 0, %s60
    %s77 = sphi 0, %s61
    %s85 = sphi 0, %s87
    %s88 = sphi 0, %s85
    %s89 = sphi 0, %s88
    %s105 = sphi 0, %s89
    %s113 = sphi 0, %s115
    %s116 = sphi 0, %s113
    %s117 = sphi 0, %s116
    %s133 = sphi 0, %s117
  $region4: #{tpu_custom_call.1} parent=0 // loop_header_branch
    %12 = sbr.rel (%p10) target = $region8
  $region5: #{tpu_custom_call.1} parent=0 // loop_body
    %s14 = ssub.s32 %s9, 1
    %s15 = ssub.s32 %s9, 2
    %s22 = sadd.s32 1, %s17
    %p23 = scmp.ge.s32.totalorder %s22, 1
    %s24 = scalar_select %p23, 0, %s22
    %s25 = sadd.s32 1, %s16
    %s26 = scalar_select %p23, %s25, %s16
    %p27 = scmp.ge.s32.totalorder %s26, 2
    %s28 = scalar_select %p27, 0, %s26
    %s29 = ssub.s32 %s16, %s28
    %p30 = scmp.eq.s32.totalorder %s29, 0
    %s32 = sadd.s32 %s31, 1
    %s33 = scalar_select %p30, %s31, %s32
    %p36 = pneg %p30
    %p37 = scmp.eq.s32.totalorder %s9, 1
    %p38 = por %p36, %p37
    %p39 = scmp.ne.s32.totalorder %s31, %s34
    %p40 = scmp.eq.s32.totalorder %s9, 0
    %p41 = por %p39, %p40
    %p42 = scmp.ne.s32.totalorder %s31, %s34
    %p43 = scmp.eq.s32.totalorder %s14, 1
    %p44 = por %p42, %p43
    %p45 = scmp.ne.s32.totalorder %s34, %s35
    %p46 = scmp.eq.s32.totalorder %s14, 0
    %p47 = por %p45, %p46
    %p48 = scmp.ne.s32.totalorder %s34, %s35
    %p49 = scmp.eq.s32.totalorder %s15, 1
    %p50 = por %p48, %p49
    %p52 = scmp.ne.s32.totalorder %s35, %s51
    %p53 = scmp.eq.s32.totalorder %s15, 0
    %p54 = por %p52, %p53
    %s55 = ssub.s32 %s16, %s28
    %p56 = scmp.eq.s32.totalorder %s55, 0
    %s58 = sadd.s32 %s57, 1
    %s59 = scalar_select %p56, %s57, %s58
    %p62 = pneg %p56
    %p63 = scmp.eq.s32.totalorder %s9, 1
    %p64 = por %p62, %p63
    %p65 = scmp.ne.s32.totalorder %s57, %s60
    %p66 = scmp.eq.s32.totalorder %s9, 0
    %p67 = por %p65, %p66
    %p68 = scmp.ne.s32.totalorder %s57, %s60
    %p69 = scmp.eq.s32.totalorder %s14, 1
    %p70 = por %p68, %p69
    %p71 = scmp.ne.s32.totalorder %s60, %s61
    %p72 = scmp.eq.s32.totalorder %s14, 0
    %p73 = por %p71, %p72
    %p74 = scmp.ne.s32.totalorder %s60, %s61
    %p75 = scmp.eq.s32.totalorder %s15, 1
    %p76 = por %p74, %p75
    %p78 = scmp.ne.s32.totalorder %s61, %s77
    %p79 = scmp.eq.s32.totalorder %s15, 0
    %p80 = por %p78, %p79
    %s81 = ssub.s32 %s16, %s28
    %s82 = ssub.s32 %s17, %s24
    %s83 = sor.u32 %s81, %s82
    %p84 = scmp.eq.s32.totalorder %s83, 0
    %s86 = sadd.s32 %s85, 1
    %s87 = scalar_select %p84, %s85, %s86
    %p90 = pneg %p84
    %p91 = scmp.eq.s32.totalorder %s9, 1
    %p92 = por %p90, %p91
    %p93 = scmp.ne.s32.totalorder %s85, %s88
    %p94 = scmp.eq.s32.totalorder %s9, 0
    %p95 = por %p93, %p94
    %p96 = scmp.ne.s32.totalorder %s85, %s88
    %p97 = scmp.eq.s32.totalorder %s14, 1
    %p98 = por %p96, %p97
    %p99 = scmp.ne.s32.totalorder %s88, %s89
    %p100 = scmp.eq.s32.totalorder %s14, 0
    %p101 = por %p99, %p100
    %p102 = scmp.ne.s32.totalorder %s88, %s89
    %p103 = scmp.eq.s32.totalorder %s15, 1
    %p104 = por %p102, %p103
    %p106 = scmp.ne.s32.totalorder %s89, %s105
    %p107 = scmp.eq.s32.totalorder %s15, 0
    %p108 = por %p106, %p107
    %s109 = ssub.s32 %s16, %s28
    %s110 = ssub.s32 %s17, %s24
    %s111 = sor.u32 %s109, %s110
    %p112 = scmp.eq.s32.totalorder %s111, 0
    %s114 = sadd.s32 %s113, 1
    %s115 = scalar_select %p112, %s113, %s114
    %p118 = pneg %p112
    %p119 = scmp.eq.s32.totalorder %s9, 1
    %p120 = por %p118, %p119
    %p121 = scmp.ne.s32.totalorder %s113, %s116
    %p122 = scmp.eq.s32.totalorder %s9, 0
    %p123 = por %p121, %p122
    %p124 = scmp.ne.s32.totalorder %s113, %s116
    %p125 = scmp.eq.s32.totalorder %s14, 1
    %p126 = por %p124, %p125
    %p127 = scmp.ne.s32.totalorder %s116, %s117
    %p128 = scmp.eq.s32.totalorder %s14, 0
    %p129 = por %p127, %p128
    %p130 = scmp.ne.s32.totalorder %s116, %s117
    %p131 = scmp.eq.s32.totalorder %s15, 1
    %p132 = por %p130, %p131
    %p134 = scmp.ne.s32.totalorder %s117, %s133
    %p135 = scmp.eq.s32.totalorder %s15, 0
    %p136 = por %p134, %p135
    %p137 = scmp.le.s32.totalorder 1, %s9
    %p138 = scmp.lt.s32.totalorder %s9, 3
    %p139 = pnand %p137, %p138
    %p140 = pneg %p139
    // Predicated region
    $region9: #{tpu_custom_call.1} parent=5 // pred_check
      _
    $region10: #{tpu_custom_call.1} parent=5 // pred_check_branch
      %142 = sbr.rel (%p139) target = $region12
    $region11: #{tpu_custom_call.1} parent=5 // pred_region
      %s143 = ssub.s32 %s9, 1
    $region12: #{tpu_custom_call.1} parent=5 // pred_fallthru
      _
    %p144 = scmp.lt.s32.totalorder %s9, 2
    // Predicated region
    $region13: #{tpu_custom_call.1} parent=5 // pred_check
      %p145 = pneg %p144
    $region14: #{tpu_custom_call.1} parent=5 // pred_check_branch
      %147 = sbr.rel (%p145) target = $region16
    $region15: #{tpu_custom_call.1} parent=5 // pred_region
      // Predicated region
      $region17: #{tpu_custom_call.1} parent=15 // pred_check
        %p148 = pneg %p41
      $region18: #{tpu_custom_call.1} parent=15 // pred_check_branch
        %150 = sbr.rel (%p148) target = $region20
      $region19: #{tpu_custom_call.1} parent=15 // pred_region
        %p151 = scmp.lt.s32.totalorder %s16, 1
        %s152 = scalar_select %p151, %s16, 1
        %s153 = smul.addr %s152, 2
        %s154 = smul.addr %s153, 8
        %s155 = scalar_lea.vmem %s0, %s154
      $region20: #{tpu_custom_call.1} parent=15 // pred_fallthru
        _
      // Predicated region
      $region21: #{tpu_custom_call.1} parent=15 // pred_check
        %p156 = pneg %p67
      $region22: #{tpu_custom_call.1} parent=15 // pred_check_branch
        %158 = sbr.rel (%p156) target = $region24
      $region23: #{tpu_custom_call.1} parent=15 // pred_region
        %p159 = scmp.lt.s32.totalorder %s16, 1
        %s160 = scalar_select %p159, %s16, 1
        %s161 = smul.addr %s160, 2
        %s162 = smul.addr %s161, 8
        %s163 = scalar_lea.vmem %s1, %s162
      $region24: #{tpu_custom_call.1} parent=15 // pred_fallthru
        _
      // Predicated region
      $region25: #{tpu_custom_call.1} parent=15 // pred_check
        %p164 = pneg %p95
      $region26: #{tpu_custom_call.1} parent=15 // pred_check_branch
        %166 = sbr.rel (%p164) target = $region28
      $region27: #{tpu_custom_call.1} parent=15 // pred_region
        %s167 = smul.u32 8, %s17
        %p168 = scmp.lt.s32.totalorder %s16, 1
        %s169 = scalar_select %p168, %s16, 1
        %p170 = scmp.lt.s32.totalorder %s167, 7
        %s171 = scalar_select %p170, %s167, 7
        %s172 = smul.addr %s169, 8
        %s173 = sadd.s32 %s171, %s172
        %s174 = smul.addr %s173, 8
        %s175 = scalar_lea.vmem %s2, %s174
        %s176 = smul.u32 8, %s17
      $region28: #{tpu_custom_call.1} parent=15 // pred_fallthru
        _
    $region16: #{tpu_custom_call.1} parent=5 // pred_fallthru
      _
    %p177 = scmp.le.s32.totalorder 1, %s9
    %p178 = scmp.lt.s32.totalorder %s9, 3
    %p179 = pnand %p177, %p178
    %p180 = pneg %p179
    // Predicated region
    $region29: #{tpu_custom_call.1} parent=5 // pred_check
      _
    $region30: #{tpu_custom_call.1} parent=5 // pred_check_branch
      %182 = sbr.rel (%p179) target = $region32
    $region31: #{tpu_custom_call.1} parent=5 // pred_region
      %s183 = ssub.s32 %s9, 1
      %p184 = scmp.lt.s32.totalorder %s18, 1
      %s185 = scalar_select %p184, %s18, 1
      %s186 = smul.addr %s185, 2
      %s187 = smul.addr %s186, 8
      %s188 = scalar_lea.vmem %s0, %s187
      %p189 = pneg %p47
      %p190 = pneg %p44
      %p191 = scmp.lt.s32.totalorder %s18, 1
      %s192 = scalar_select %p191, %s18, 1
      %s193 = smul.addr %s192, 2
      %s194 = smul.addr %s193, 8
      %s195 = scalar_lea.vmem %s1, %s194
      %p196 = pneg %p73
      %p197 = pneg %p70
      %s198 = smul.u32 8, %s19
      %p199 = scmp.lt.s32.totalorder %s18, 1
      %s200 = scalar_select %p199, %s18, 1
      %p201 = scmp.lt.s32.totalorder %s198, 7
      %s202 = scalar_select %p201, %s198, 7
      %s203 = smul.addr %s200, 8
      %s204 = sadd.s32 %s202, %s203
      %s205 = smul.addr %s204, 8
      %s206 = scalar_lea.vmem %s2, %s205
      %p207 = pneg %p101
      %p208 = pneg %p98
      %p209 = pneg %p129
      %p210 = pneg %p126
      %s211 = smul.u32 8, %s19
      %p212 = scmp.lt.s32.totalorder %s18, 1
      %s213 = scalar_select %p212, %s18, 1
      %p214 = scmp.lt.s32.totalorder %s211, 7
      %s215 = scalar_select %p214, %s211, 7
      %s216 = smul.addr %s213, 8
      %s217 = sadd.s32 %s215, %s216
      %s218 = smul.addr %s217, 8
      %s219 = scalar_lea.vmem %s3, %s218
      %p220 = scmp.lt.s32.totalorder %s18, 1
      %s221 = scalar_select %p220, %s18, 1
      %s222 = smul.addr %s221, 2
      %s223 = smul.addr %s222, 8
      %s224 = scalar_lea.vmem %s0, %s223
      %p225 = scmp.lt.s32.totalorder %s18, 1
      %s226 = scalar_select %p225, %s18, 1
      %s227 = smul.addr %s226, 2
      %s228 = smul.addr %s227, 8
      %s229 = scalar_lea.vmem %s1, %s228
      %s230 = smul.u32 8, %s19
      %p231 = scmp.lt.s32.totalorder %s18, 1
      %s232 = scalar_select %p231, %s18, 1
      %p233 = scmp.lt.s32.totalorder %s230, 7
      %s234 = scalar_select %p233, %s230, 7
      %s235 = smul.addr %s232, 8
      %s236 = sadd.s32 %s234, %s235
      %s237 = smul.addr %s236, 8
      %s238 = scalar_lea.vmem %s2, %s237
      %s239 = smul.u32 8, %s19
      %s240 = smul.u32 8, %s19
      %p241 = scmp.lt.s32.totalorder %s18, 1
      %s242 = scalar_select %p241, %s18, 1
      %p243 = scmp.lt.s32.totalorder %s240, 7
      %s244 = scalar_select %p243, %s240, 7
      %s245 = smul.addr %s242, 8
      %s246 = sadd.s32 %s244, %s245
      %s247 = smul.addr %s246, 8
      %s248 = scalar_lea.vmem %s3, %s247
      %s249 = smul.u32 8, %s19
      %v250 = vld [vmem:[%s238] sm:$0xff]
      %v251 = vld [vmem:[%s238 + $0x8] sm:$0xff]
      %v252 = vld [vmem:[%s238 + $0x10] sm:$0xff]
      %v253 = vld [vmem:[%s238 + $0x18] sm:$0xff]
      %v254 = vld [vmem:[%s238 + $0x20] sm:$0xff]
      %v255 = vld [vmem:[%s238 + $0x28] sm:$0xff]
      %v256 = vld [vmem:[%s238 + $0x30] sm:$0xff]
      %v257 = vld [vmem:[%s238 + $0x38] sm:$0xff]
      %v258 = vld [vmem:[%s229] sm:$0xff]
      %v259 = vld [vmem:[%s229 + $0x8] sm:$0xff]
      %vm260 = vcmask 130048
      %v262 = vsel %vm260, %v250, 0
      %v265 = vsel %vm260, %v251, 0
      %v268 = vsel %vm260, %v252, 0
      %v271 = vsel %vm260, %v253, 0
      %v274 = vsel %vm260, %v254, 0
      %v277 = vsel %vm260, %v255, 0
      %v280 = vsel %vm260, %v256, 0
      %v283 = vsel %vm260, %v257, 0
      %285 = vmatpush.msra.mxu0 0.0
      %286 = vmatpush.msra.mxu0 0.0
      %287 = vmatpush.msra.mxu0 0.0
      %288 = vmatpush.msra.mxu0 0.0
      %289 = vmatpush.msra.mxu0 0.0
      %290 = vmatpush.msra.mxu0 0.0
      %291 = vmatpush.msra.mxu0 0.0
      %292 = vmatpush.msra.mxu0 0.0
      %293 = vmatpush.msra.mxu0 0.0
      %294 = vmatpush.msra.mxu0 0.0
      %295 = vmatpush.msra.mxu0 0.0
      %296 = vmatpush.msra.mxu0 0.0
      %297 = vmatpush.msra.mxu0 0.0
      %298 = vmatpush.msra.mxu0 0.0
      %299 = vmatpush.msra.mxu0 %v259
      %300 = vmatpush.msra.mxu0 %v258
      %301 = vmatmul.f32.gmra.mxu0 %v262
      %v302 = vpop.f32.mrf.mxu0
      %v303 = vadd.f32 0.0, %v302
      %304 = vmatmul.f32.gmra.mxu0 %v265
      %v305 = vpop.f32.mrf.mxu0
      %v306 = vadd.f32 0.0, %v305
      %307 = vmatmul.f32.gmra.mxu0 %v268
      %v308 = vpop.f32.mrf.mxu0
      %v309 = vadd.f32 0.0, %v308
      %310 = vmatmul.f32.gmra.mxu0 %v271
      %v311 = vpop.f32.mrf.mxu0
      %v312 = vadd.f32 0.0, %v311
      %313 = vmatmul.f32.gmra.mxu0 %v274
      %v314 = vpop.f32.mrf.mxu0
      %v315 = vadd.f32 0.0, %v314
      %316 = vmatmul.f32.gmra.mxu0 %v277
      %v317 = vpop.f32.mrf.mxu0
      %v318 = vadd.f32 0.0, %v317
      %319 = vmatmul.f32.gmra.mxu0 %v280
      %v320 = vpop.f32.mrf.mxu0
      %v321 = vadd.f32 0.0, %v320
      %322 = vmatmul.f32.gmra.mxu0 %v283
      %v323 = vpop.f32.mrf.mxu0
      %v324 = vadd.f32 0.0, %v323
      %325 = vdwg.mxu0
      %326 = vxpose.xlu0.b32.start [1/16] %v303, 128
      %327 = vxpose.xlu0.b32.cont [2/16] %v306, 128
      %328 = vxpose.xlu0.b32.cont [3/16] 0.0, 128
      %329 = vxpose.xlu0.b32.cont [4/16] 0.0, 128
      %330 = vxpose.xlu0.b32.cont [5/16] 0.0, 128
      %331 = vxpose.xlu0.b32.cont [6/16] 0.0, 128
      %332 = vxpose.xlu0.b32.cont [7/16] 0.0, 128
      %333 = vxpose.xlu0.b32.cont [8/16] 0.0, 128
      %334 = vxpose.xlu0.b32.cont [9/16] 0.0, 128
      %335 = vxpose.xlu0.b32.cont [10/16] 0.0, 128
      %336 = vxpose.xlu0.b32.cont [11/16] 0.0, 128
      %337 = vxpose.xlu0.b32.cont [12/16] 0.0, 128
      %338 = vxpose.xlu0.b32.cont [13/16] 0.0, 128
      %339 = vxpose.xlu0.b32.cont [14/16] 0.0, 128
      %340 = vxpose.xlu0.b32.cont [15/16] 0.0, 128
      %341 = vxpose.xlu0.b32.end [16/16] 0.0, 128
      %v342 = vpop.trf.xlu0
      %v343 = vpop.trf.xlu0
      %v344 = vpop.trf.xlu0
      %v345 = vpop.trf.xlu0
      %v346 = vpop.trf.xlu0
      %v347 = vpop.trf.xlu0
      %v348 = vpop.trf.xlu0
      %v349 = vpop.trf.xlu0
      %v350 = vpop.trf.xlu0
      %v351 = vpop.trf.xlu0
      %v352 = vpop.trf.xlu0
      %v353 = vpop.trf.xlu0
      %v354 = vpop.trf.xlu0
      %v355 = vpop.trf.xlu0
      %v356 = vpop.trf.xlu0
      %v357 = vpop.trf.xlu0
      %358 = vxpose.xlu0.b32.start [1/16] %v309, 128
      %359 = vxpose.xlu0.b32.cont [2/16] %v312, 128
      %360 = vxpose.xlu0.b32.cont [3/16] 0.0, 128
      %361 = vxpose.xlu0.b32.cont [4/16] 0.0, 128
      %362 = vxpose.xlu0.b32.cont [5/16] 0.0, 128
      %363 = vxpose.xlu0.b32.cont [6/16] 0.0, 128
      %364 = vxpose.xlu0.b32.cont [7/16] 0.0, 128
      %365 = vxpose.xlu0.b32.cont [8/16] 0.0, 128
      %366 = vxpose.xlu0.b32.cont [9/16] 0.0, 128
      %367 = vxpose.xlu0.b32.cont [10/16] 0.0, 128
      %368 = vxpose.xlu0.b32.cont [11/16] 0.0, 128
      %369 = vxpose.xlu0.b32.cont [12/16] 0.0, 128
      %370 = vxpose.xlu0.b32.cont [13/16] 0.0, 128
      %371 = vxpose.xlu0.b32.cont [14/16] 0.0, 128
      %372 = vxpose.xlu0.b32.cont [15/16] 0.0, 128
      %373 = vxpose.xlu0.b32.end [16/16] 0.0, 128
      %v374 = vpop.trf.xlu0
      %v375 = vpop.trf.xlu0
      %v376 = vpop.trf.xlu0
      %v377 = vpop.trf.xlu0
      %v378 = vpop.trf.xlu0
      %v379 = vpop.trf.xlu0
      %v380 = vpop.trf.xlu0
      %v381 = vpop.trf.xlu0
      %v382 = vpop.trf.xlu0
      %v383 = vpop.trf.xlu0
      %v384 = vpop.trf.xlu0
      %v385 = vpop.trf.xlu0
      %v386 = vpop.trf.xlu0
      %v387 = vpop.trf.xlu0
      %v388 = vpop.trf.xlu0
      %v389 = vpop.trf.xlu0
      %390 = vxpose.xlu0.b32.start [1/16] %v315, 128
      %391 = vxpose.xlu0.b32.cont [2/16] %v318, 128
      %392 = vxpose.xlu0.b32.cont [3/16] 0.0, 128
      %393 = vxpose.xlu0.b32.cont [4/16] 0.0, 128
      %394 = vxpose.xlu0.b32.cont [5/16] 0.0, 128
      %395 = vxpose.xlu0.b32.cont [6/16] 0.0, 128
      %396 = vxpose.xlu0.b32.cont [7/16] 0.0, 128
      %397 = vxpose.xlu0.b32.cont [8/16] 0.0, 128
      %398 = vxpose.xlu0.b32.cont [9/16] 0.0, 128
      %399 = vxpose.xlu0.b32.cont [10/16] 0.0, 128
      %400 = vxpose.xlu0.b32.cont [11/16] 0.0, 128
      %401 = vxpose.xlu0.b32.cont [12/16] 0.0, 128
      %402 = vxpose.xlu0.b32.cont [13/16] 0.0, 128
      %403 = vxpose.xlu0.b32.cont [14/16] 0.0, 128
      %404 = vxpose.xlu0.b32.cont [15/16] 0.0, 128
      %405 = vxpose.xlu0.b32.end [16/16] 0.0, 128
      %v406 = vpop.trf.xlu0
      %v407 = vpop.trf.xlu0
      %v408 = vpop.trf.xlu0
      %v409 = vpop.trf.xlu0
      %v410 = vpop.trf.xlu0
      %v411 = vpop.trf.xlu0
      %v412 = vpop.trf.xlu0
      %v413 = vpop.trf.xlu0
      %v414 = vpop.trf.xlu0
      %v415 = vpop.trf.xlu0
      %v416 = vpop.trf.xlu0
      %v417 = vpop.trf.xlu0
      %v418 = vpop.trf.xlu0
      %v419 = vpop.trf.xlu0
      %v420 = vpop.trf.xlu0
      %v421 = vpop.trf.xlu0
      %422 = vxpose.xlu0.b32.start [1/16] %v321, 128
      %423 = vxpose.xlu0.b32.cont [2/16] %v324, 128
      %424 = vxpose.xlu0.b32.cont [3/16] 0.0, 128
      %425 = vxpose.xlu0.b32.cont [4/16] 0.0, 128
      %426 = vxpose.xlu0.b32.cont [5/16] 0.0, 128
      %427 = vxpose.xlu0.b32.cont [6/16] 0.0, 128
      %428 = vxpose.xlu0.b32.cont [7/16] 0.0, 128
      %429 = vxpose.xlu0.b32.cont [8/16] 0.0, 128
      %430 = vxpose.xlu0.b32.cont [9/16] 0.0, 128
      %431 = vxpose.xlu0.b32.cont [10/16] 0.0, 128
      %432 = vxpose.xlu0.b32.cont [11/16] 0.0, 128
      %433 = vxpose.xlu0.b32.cont [12/16] 0.0, 128
      %434 = vxpose.xlu0.b32.cont [13/16] 0.0, 128
      %435 = vxpose.xlu0.b32.cont [14/16] 0.0, 128
      %436 = vxpose.xlu0.b32.cont [15/16] 0.0, 128
      %437 = vxpose.xlu0.b32.end [16/16] 0.0, 128
      %v438 = vpop.trf.xlu0
      %v439 = vpop.trf.xlu0
      %v440 = vpop.trf.xlu0
      %v441 = vpop.trf.xlu0
      %v442 = vpop.trf.xlu0
      %v443 = vpop.trf.xlu0
      %v444 = vpop.trf.xlu0
      %v445 = vpop.trf.xlu0
      %v446 = vpop.trf.xlu0
      %v447 = vpop.trf.xlu0
      %v448 = vpop.trf.xlu0
      %v449 = vpop.trf.xlu0
      %v450 = vpop.trf.xlu0
      %v451 = vpop.trf.xlu0
      %v452 = vpop.trf.xlu0
      %v453 = vpop.trf.xlu0
      %v454 = vld [vmem:[%s224] sm:$0xff]
      %v455 = vld [vmem:[%s224 + $0x8] sm:$0xff]
      %v457 = vsel %vm260, %v342, 0
      %v460 = vsel %vm260, %v343, 0
      %v463 = vsel %vm260, %v374, 0
      %v466 = vsel %vm260, %v375, 0
      %v469 = vsel %vm260, %v406, 0
      %v472 = vsel %vm260, %v407, 0
      %v475 = vsel %vm260, %v438, 0
      %v478 = vsel %vm260, %v439, 0
      %480 = vmatpush.msra.mxu0 0.0
      %481 = vmatpush.msra.mxu0 0.0
      %482 = vmatpush.msra.mxu0 0.0
      %483 = vmatpush.msra.mxu0 0.0
      %484 = vmatpush.msra.mxu0 0.0
      %485 = vmatpush.msra.mxu0 0.0
      %486 = vmatpush.msra.mxu0 0.0
      %487 = vmatpush.msra.mxu0 0.0
      %488 = vmatpush.msra.mxu0 0.0
      %489 = vmatpush.msra.mxu0 0.0
      %490 = vmatpush.msra.mxu0 0.0
      %491 = vmatpush.msra.mxu0 0.0
      %492 = vmatpush.msra.mxu0 0.0
      %493 = vmatpush.msra.mxu0 0.0
      %494 = vmatpush.msra.mxu0 %v455
      %495 = vmatpush.msra.mxu0 %v454
      %496 = vmatmul.f32.gmra.mxu0 %v457
      %v497 = vpop.f32.mrf.mxu0
      %v498 = vadd.f32 0.0, %v497
      %499 = vmatmul.f32.gmra.mxu0 %v460
      %v500 = vpop.f32.mrf.mxu0
      %v501 = vadd.f32 0.0, %v500
      %502 = vmatmul.f32.gmra.mxu0 %v463
      %v503 = vpop.f32.mrf.mxu0
      %v504 = vadd.f32 0.0, %v503
      %505 = vmatmul.f32.gmra.mxu0 %v466
      %v506 = vpop.f32.mrf.mxu0
      %v507 = vadd.f32 0.0, %v506
      %508 = vmatmul.f32.gmra.mxu0 %v469
      %v509 = vpop.f32.mrf.mxu0
      %v510 = vadd.f32 0.0, %v509
      %511 = vmatmul.f32.gmra.mxu0 %v472
      %v512 = vpop.f32.mrf.mxu0
      %v513 = vadd.f32 0.0, %v512
      %514 = vmatmul.f32.gmra.mxu0 %v475
      %v515 = vpop.f32.mrf.mxu0
      %v516 = vadd.f32 0.0, %v515
      %517 = vmatmul.f32.gmra.mxu0 %v478
      %v518 = vpop.f32.mrf.mxu0
      %v519 = vadd.f32 0.0, %v518
      %520 = vdwg.mxu0
      %521 = vxpose.xlu0.b32.start [1/16] %v498, 128
      %522 = vxpose.xlu0.b32.cont [2/16] %v501, 128
      %523 = vxpose.xlu0.b32.cont [3/16] 0.0, 128
      %524 = vxpose.xlu0.b32.cont [4/16] 0.0, 128
      %525 = vxpose.xlu0.b32.cont [5/16] 0.0, 128
      %526 = vxpose.xlu0.b32.cont [6/16] 0.0, 128
      %527 = vxpose.xlu0.b32.cont [7/16] 0.0, 128
      %528 = vxpose.xlu0.b32.cont [8/16] 0.0, 128
      %529 = vxpose.xlu0.b32.cont [9/16] 0.0, 128
      %530 = vxpose.xlu0.b32.cont [10/16] 0.0, 128
      %531 = vxpose.xlu0.b32.cont [11/16] 0.0, 128
      %532 = vxpose.xlu0.b32.cont [12/16] 0.0, 128
      %533 = vxpose.xlu0.b32.cont [13/16] 0.0, 128
      %534 = vxpose.xlu0.b32.cont [14/16] 0.0, 128
      %535 = vxpose.xlu0.b32.cont [15/16] 0.0, 128
      %536 = vxpose.xlu0.b32.end [16/16] 0.0, 128
      %v537 = vpop.trf.xlu0
      %v538 = vpop.trf.xlu0
      %v539 = vpop.trf.xlu0
      %v540 = vpop.trf.xlu0
      %v541 = vpop.trf.xlu0
      %v542 = vpop.trf.xlu0
      %v543 = vpop.trf.xlu0
      %v544 = vpop.trf.xlu0
      %v545 = vpop.trf.xlu0
      %v546 = vpop.trf.xlu0
      %v547 = vpop.trf.xlu0
      %v548 = vpop.trf.xlu0
      %v549 = vpop.trf.xlu0
      %v550 = vpop.trf.xlu0
      %v551 = vpop.trf.xlu0
      %v552 = vpop.trf.xlu0
      %553 = vxpose.xlu0.b32.start [1/16] %v504, 128
      %554 = vxpose.xlu0.b32.cont [2/16] %v507, 128
      %555 = vxpose.xlu0.b32.cont [3/16] 0.0, 128
      %556 = vxpose.xlu0.b32.cont [4/16] 0.0, 128
      %557 = vxpose.xlu0.b32.cont [5/16] 0.0, 128
      %558 = vxpose.xlu0.b32.cont [6/16] 0.0, 128
      %559 = vxpose.xlu0.b32.cont [7/16] 0.0, 128
      %560 = vxpose.xlu0.b32.cont [8/16] 0.0, 128
      %561 = vxpose.xlu0.b32.cont [9/16] 0.0, 128
      %562 = vxpose.xlu0.b32.cont [10/16] 0.0, 128
      %563 = vxpose.xlu0.b32.cont [11/16] 0.0, 128
      %564 = vxpose.xlu0.b32.cont [12/16] 0.0, 128
      %565 = vxpose.xlu0.b32.cont [13/16] 0.0, 128
      %566 = vxpose.xlu0.b32.cont [14/16] 0.0, 128
      %567 = vxpose.xlu0.b32.cont [15/16] 0.0, 128
      %568 = vxpose.xlu0.b32.end [16/16] 0.0, 128
      %v569 = vpop.trf.xlu0
      %v570 = vpop.trf.xlu0
      %v571 = vpop.trf.xlu0
      %v572 = vpop.trf.xlu0
      %v573 = vpop.trf.xlu0
      %v574 = vpop.trf.xlu0
      %v575 = vpop.trf.xlu0
      %v576 = vpop.trf.xlu0
      %v577 = vpop.trf.xlu0
      %v578 = vpop.trf.xlu0
      %v579 = vpop.trf.xlu0
      %v580 = vpop.trf.xlu0
      %v581 = vpop.trf.xlu0
      %v582 = vpop.trf.xlu0
      %v583 = vpop.trf.xlu0
      %v584 = vpop.trf.xlu0
      %585 = vxpose.xlu0.b32.start [1/16] %v510, 128
      %586 = vxpose.xlu0.b32.cont [2/16] %v513, 128
      %587 = vxpose.xlu0.b32.cont [3/16] 0.0, 128
      %588 = vxpose.xlu0.b32.cont [4/16] 0.0, 128
      %589 = vxpose.xlu0.b32.cont [5/16] 0.0, 128
      %590 = vxpose.xlu0.b32.cont [6/16] 0.0, 128
      %591 = vxpose.xlu0.b32.cont [7/16] 0.0, 128
      %592 = vxpose.xlu0.b32.cont [8/16] 0.0, 128
      %593 = vxpose.xlu0.b32.cont [9/16] 0.0, 128
      %594 = vxpose.xlu0.b32.cont [10/16] 0.0, 128
      %595 = vxpose.xlu0.b32.cont [11/16] 0.0, 128
      %596 = vxpose.xlu0.b32.cont [12/16] 0.0, 128
      %597 = vxpose.xlu0.b32.cont [13/16] 0.0, 128
      %598 = vxpose.xlu0.b32.cont [14/16] 0.0, 128
      %599 = vxpose.xlu0.b32.cont [15/16] 0.0, 128
      %600 = vxpose.xlu0.b32.end [16/16] 0.0, 128
      %v601 = vpop.trf.xlu0
      %v602 = vpop.trf.xlu0
      %v603 = vpop.trf.xlu0
      %v604 = vpop.trf.xlu0
      %v605 = vpop.trf.xlu0
      %v606 = vpop.trf.xlu0
      %v607 = vpop.trf.xlu0
      %v608 = vpop.trf.xlu0
      %v609 = vpop.trf.xlu0
      %v610 = vpop.trf.xlu0
      %v611 = vpop.trf.xlu0
      %v612 = vpop.trf.xlu0
      %v613 = vpop.trf.xlu0
      %v614 = vpop.trf.xlu0
      %v615 = vpop.trf.xlu0
      %v616 = vpop.trf.xlu0
      %617 = vxpose.xlu0.b32.start [1/16] %v516, 128
      %618 = vxpose.xlu0.b32.cont [2/16] %v519, 128
      %619 = vxpose.xlu0.b32.cont [3/16] 0.0, 128
      %620 = vxpose.xlu0.b32.cont [4/16] 0.0, 128
      %621 = vxpose.xlu0.b32.cont [5/16] 0.0, 128
      %622 = vxpose.xlu0.b32.cont [6/16] 0.0, 128
      %623 = vxpose.xlu0.b32.cont [7/16] 0.0, 128
      %624 = vxpose.xlu0.b32.cont [8/16] 0.0, 128
      %625 = vxpose.xlu0.b32.cont [9/16] 0.0, 128
      %626 = vxpose.xlu0.b32.cont [10/16] 0.0, 128
      %627 = vxpose.xlu0.b32.cont [11/16] 0.0, 128
      %628 = vxpose.xlu0.b32.cont [12/16] 0.0, 128
      %629 = vxpose.xlu0.b32.cont [13/16] 0.0, 128
      %630 = vxpose.xlu0.b32.cont [14/16] 0.0, 128
      %631 = vxpose.xlu0.b32.cont [15/16] 0.0, 128
      %632 = vxpose.xlu0.b32.end [16/16] 0.0, 128
      %v633 = vpop.trf.xlu0
      %v634 = vpop.trf.xlu0
      %v635 = vpop.trf.xlu0
      %v636 = vpop.trf.xlu0
      %v637 = vpop.trf.xlu0
      %v638 = vpop.trf.xlu0
      %v639 = vpop.trf.xlu0
      %v640 = vpop.trf.xlu0
      %v641 = vpop.trf.xlu0
      %v642 = vpop.trf.xlu0
      %v643 = vpop.trf.xlu0
      %v644 = vpop.trf.xlu0
      %v645 = vpop.trf.xlu0
      %v646 = vpop.trf.xlu0
      %v647 = vpop.trf.xlu0
      %v648 = vpop.trf.xlu0
      %649 = vst.msk [vmem:[%s248] sm:$0xff] %vm260, %v537
      %650 = vst.msk [vmem:[%s248 + $0x8] sm:$0xff] %vm260, %v538
      %651 = vst.msk [vmem:[%s248 + $0x10] sm:$0xff] %vm260, %v569
      %652 = vst.msk [vmem:[%s248 + $0x18] sm:$0xff] %vm260, %v570
      %653 = vst.msk [vmem:[%s248 + $0x20] sm:$0xff] %vm260, %v601
      %654 = vst.msk [vmem:[%s248 + $0x28] sm:$0xff] %vm260, %v602
      %655 = vst.msk [vmem:[%s248 + $0x30] sm:$0xff] %vm260, %v633
      %656 = vst.msk [vmem:[%s248 + $0x38] sm:$0xff] %vm260, %v634
      %s657 = smul.u32 8, %s19
      %p658 = scmp.lt.s32.totalorder %s18, 1
      %s659 = scalar_select %p658, %s18, 1
      %p660 = scmp.lt.s32.totalorder %s657, 7
      %s661 = scalar_select %p660, %s657, 7
      %s662 = smul.addr %s659, 8
      %s663 = sadd.s32 %s661, %s662
      %s664 = smul.addr %s663, 8
      %s665 = scalar_lea.vmem %s3, %s664
      // Predicated region
      $region33: #{tpu_custom_call.1} parent=31 // pred_check
        %p666 = pneg %p126
      $region34: #{tpu_custom_call.1} parent=31 // pred_check_branch
        %668 = sbr.rel (%p666) target = $region36
      $region35: #{tpu_custom_call.1} parent=31 // pred_region
        %s669 = smul.u32 8, %s19
      $region36: #{tpu_custom_call.1} parent=31 // pred_fallthru
        _
    $region32: #{tpu_custom_call.1} parent=5 // pred_fallthru
      _
    %p670 = scmp.le.s32.totalorder 2, %s9
    // Predicated region
    $region37: #{tpu_custom_call.1} parent=5 // pred_check
      %p671 = pneg %p670
    $region38: #{tpu_custom_call.1} parent=5 // pred_check_branch
      %673 = sbr.rel (%p671) target = $region40
    $region39: #{tpu_custom_call.1} parent=5 // pred_region
      %s674 = ssub.s32 %s9, 2
      // Predicated region
      $region41: #{tpu_custom_call.1} parent=39 // pred_check
        %p675 = pneg %p132
      $region42: #{tpu_custom_call.1} parent=39 // pred_check_branch
        %677 = sbr.rel (%p675) target = $region44
      $region43: #{tpu_custom_call.1} parent=39 // pred_region
        %s678 = smul.u32 8, %s21
        %p679 = scmp.lt.s32.totalorder %s20, 1
        %s680 = scalar_select %p679, %s20, 1
        %p681 = scmp.lt.s32.totalorder %s678, 7
        %s682 = scalar_select %p681, %s678, 7
        %s683 = smul.addr %s680, 8
        %s684 = sadd.s32 %s682, %s683
        %s685 = smul.addr %s684, 8
        %s686 = scalar_lea.vmem %s3, %s685
      $region44: #{tpu_custom_call.1} parent=39 // pred_fallthru
        _
    $region40: #{tpu_custom_call.1} parent=5 // pred_fallthru
      _
  $region6: #{tpu_custom_call.1} parent=0 // loop_footer
    %s13 = sadd.s32 1, %s9
  $region7: #{tpu_custom_call.1} parent=0 // loop_footer_branch
    %8 = sbr.rel target = $region3
  $region8: #{tpu_custom_call.1} parent=0 // loop_exit
    _

</llo_original>
